<compile_context>
chip_gen: v7x
topology: tpu7x:2x2x1
jax: 0.10.0
libtpu: 0.0.40
codegen_flags: <defaults>
</compile_context>

<pallas_src>
import math

import jax
import jax.numpy as jnp
from jax.experimental import pallas as pl
from jax.experimental.pallas import tpu as pltpu


def build_positional_table(d_e: int = 128, max_len: int = 24) -> jnp.ndarray:
    """Deterministic stand-in for the dates.json-derived encoding table.

    Returns p with shape (max_len, d_e), float32.
    """
    # TODO(synk): the real module parses acquisition dates from dates.json; we
    # synthesize a deterministic 10-day revisit cadence (days[i] = 10 * i).
    # The log(1000.0) base below matches the original PyTorch module.
    days = (jnp.arange(max_len, dtype=jnp.float32) * 10.0)[:, None]      # (T, 1)
    div_term = jnp.exp(
        jnp.arange(0, d_e, 2, dtype=jnp.float32) * (-math.log(1000.0) / d_e)
    )                                                                     # (D/2,)
    angles = days * div_term                                              # (T, D/2)
    p = jnp.zeros((max_len, d_e), dtype=jnp.float32)
    p = p.at[:, 0::2].set(jnp.sin(angles))
    p = p.at[:, 1::2].set(jnp.cos(angles))
    return p                                                              # (T, D)


def _add_pe_kernel(x_ref, p_ref, o_ref):
    # x_ref: (B, T, D); p_ref: (T, D).  Leading-dim broadcast of the table is
    # free (no lane/sublane shuffles); the add is a whole-vreg VPU op.
    # .astype is a no-op when dtypes already match (they do after the wrapper
    # casts p to x.dtype).
    o_ref[...] = (x_ref[...] + p_ref[...][None]).astype(o_ref.dtype)


def positional_encoding_forward(x: jnp.ndarray, p: jnp.ndarray) -> jnp.ndarray:
    """x: (B, T, D); p: (T, D). Returns x + p broadcast over batch, shape (B, T, D)."""
    B, T, D = x.shape
    assert p.shape == (T, D)

    # Match the table dtype to the activations once at setup: for bf16 x this
    # halves the table's HBM/DMA bytes and keeps the add in the native VALU
    # width; for f32 x it's a no-op.
    p = p.astype(x.dtype)

    # Grid-less call: both operands and the output are whole-array VMEM blocks
    # (no pipelining needed for a ~72 KiB working set).
    return pl.pallas_call(
        _add_pe_kernel,
        out_shape=jax.ShapeDtypeStruct((B, T, D), x.dtype),
        in_specs=[
            pl.BlockSpec(memory_space=pltpu.MemorySpace.VMEM),   # x, whole array
            pl.BlockSpec(memory_space=pltpu.MemorySpace.VMEM),   # p, whole table
        ],
        out_specs=pl.BlockSpec(memory_space=pltpu.MemorySpace.VMEM),
    )(x, p)


if __name__ == "__main__":
    d_e, max_len, batch = 128, 24, 2

    p = build_positional_table(d_e=d_e, max_len=max_len)        # (T, D)

    key = jax.random.PRNGKey(0)
    x = jax.random.normal(key, (batch, max_len, d_e), dtype=jnp.float32)

    out = positional_encoding_forward(x, p)
    out = jax.block_until_ready(out)

    # Correctness check against plain-JAX reference.
    ref = x + p[None, :, :]
    assert out.shape == (batch, max_len, d_e)
    assert jnp.allclose(out, ref, atol=1e-6), "mismatch vs reference"

    print("KERNEL_OK")
</pallas_src>

<mosaic_0001>
module attributes {stable_mosaic.version = 11 : i64} {
  func.func @_add_pe_kernel(%arg0: memref<2x24x128xf32, #tpu.memory_space<vmem>>, %arg1: memref<24x128xf32, #tpu.memory_space<vmem>>, %arg2: memref<2x24x128xf32, #tpu.memory_space<vmem>>) attributes {dimension_semantics = [], scalar_prefetch = 0 : i64, scratch_operands = 0 : i64, tpu.core_type = #tpu.core_type<tc>} {
    %c0 = arith.constant 0 : index
    %c0_0 = arith.constant 0 : index
    %c0_1 = arith.constant 0 : index
    %0 = vector.load %arg0[%c0, %c0_0, %c0_1] : memref<2x24x128xf32, #tpu.memory_space<vmem>>, vector<2x24x128xf32>
    %c0_2 = arith.constant 0 : index
    %c0_3 = arith.constant 0 : index
    %1 = vector.load %arg1[%c0_2, %c0_3] : memref<24x128xf32, #tpu.memory_space<vmem>>, vector<24x128xf32>
    %2 = vector.shape_cast %1 : vector<24x128xf32> to vector<1x24x128xf32>
    %3 = vector.broadcast %2 : vector<1x24x128xf32> to vector<2x24x128xf32>
    %4 = arith.addf %0, %3 : vector<2x24x128xf32>
    %c0_4 = arith.constant 0 : index
    %c0_5 = arith.constant 0 : index
    %c0_6 = arith.constant 0 : index
    %5 = vector.load %arg2[%c0_4, %c0_5, %c0_6] : memref<2x24x128xf32, #tpu.memory_space<vmem>>, vector<2x24x128xf32>
    tpu.vector_store %arg2[%c0_4, %c0_5, %c0_6], %4 {strides = array<i32>} : memref<2x24x128xf32, #tpu.memory_space<vmem>>, vector<2x24x128xf32>,
    return
  }
}

</mosaic_0001>

<llo_original>
// kernel: tpu_custom_call.1
$region0: #{tpu_custom_call.1}
  #allocation0 [shape = 'u32[]', space=smem, size = 0x4, offset = 0x4, fixed_abs, tag = 'smem constant byte address 0x4 - core index']
  #allocation1 [shape = 'u32[144,128]{1,0:T(1,128)}', space=vmem, size = 0x12000, scoped, tag = 'internal scratch']
  %s0 = inlined_call_operand.hbm [shape: f32[2,24,128], index: 0, kind: input, shape index: {}]
  %s1 = inlined_call_operand.hbm [shape: f32[24,128], index: 1, kind: input, shape index: {}]
  %s2 = inlined_call_operand.hbm [shape: f32[2,24,128], index: 2, kind: output, shape index: {}]
  %s3 = sld [smem:[#allocation0]]
  $region26: #{tpu_custom_call.1} parent=0
    _
  %s5 = ssub.s32 1, %s3
  %s6 = scalar_select 0, %s5, %s3
  $region1: #{tpu_custom_call.1} parent=0
    #allocation2 [shape = 'u8[24576]{0}', space=vmem, size = 0x6000, scoped, tag = 'input window, operand 0, single buffered']
    #allocation3 [shape = 's32[1]{0}', space=sflag, size = 0x4, scoped, tag = 'scoped memory for tpu_custom_call.1']
    #allocation4 [shape = 's32[1]{0}', space=sflag, size = 0x4, scoped, tag = 'scoped memory for tpu_custom_call.1']
    #allocation5 [shape = 'u8[12288]{0}', space=vmem, size = 0x3000, scoped, tag = 'input window, operand 1, single buffered']
    #allocation6 [shape = 's32[1]{0}', space=sflag, size = 0x4, scoped, tag = 'scoped memory for tpu_custom_call.1']
    #allocation7 [shape = 'u8[24576]{0}', space=vmem, size = 0x6000, scoped, tag = 'output window, operand 0, single buffered']
    %7 = vsyncpa [#allocation3], 0
    %8 = vsyncpa [#allocation6], 0
    %9 = vsyncpa [#allocation4], 0
    // Predicated region
    $region2: #{tpu_custom_call.1} parent=1 // pred_check
      _
    $region3: #{tpu_custom_call.1} parent=1 // pred_check_branch
      %11 = sbr.rel (0) target = $region5
    $region4: #{tpu_custom_call.1} parent=1 // pred_region
      %s13 = ssub.s32 768, 768
      %14 = vsyncadd [#allocation3], %s13
      %s15 = sshll.u32 [#allocation2], 4
      %s16 = int_to_ptr.vmem [resolvable:$true] %s15
      %21 = dma.hbm_to_vmem [thread:$0]  %s0, 768, %s16, [#allocation3], 128, 128, 8
    $region5: #{tpu_custom_call.1} parent=1 // pred_fallthru
      _
    // Predicated region
    $region6: #{tpu_custom_call.1} parent=1 // pred_check
      _
    $region7: #{tpu_custom_call.1} parent=1 // pred_check_branch
      %23 = sbr.rel (0) target = $region9
    $region8: #{tpu_custom_call.1} parent=1 // pred_region
      %s25 = ssub.s32 384, 384
      %26 = vsyncadd [#allocation6], %s25
      %s27 = sshll.u32 [#allocation5], 4
      %s28 = int_to_ptr.vmem [resolvable:$true] %s27
      %33 = dma.hbm_to_vmem [thread:$0]  %s1, 384, %s28, [#allocation6], 128, 128, 8
    $region9: #{tpu_custom_call.1} parent=1 // pred_fallthru
      _
    // Predicated region
    $region10: #{tpu_custom_call.1} parent=1 // pred_check
      _
    $region11: #{tpu_custom_call.1} parent=1 // pred_check_branch
      %35 = sbr.rel (0) target = $region13
    $region12: #{tpu_custom_call.1} parent=1 // pred_region
      %36 = dma.done [#allocation3], 768
    $region13: #{tpu_custom_call.1} parent=1 // pred_fallthru
      _
    // Predicated region
    $region14: #{tpu_custom_call.1} parent=1 // pred_check
      _
    $region15: #{tpu_custom_call.1} parent=1 // pred_check_branch
      %38 = sbr.rel (0) target = $region17
    $region16: #{tpu_custom_call.1} parent=1 // pred_region
      %39 = dma.done [#allocation6], 384
    $region17: #{tpu_custom_call.1} parent=1 // pred_fallthru
      _
    %v40 = vld [vmem:[#allocation2] sm:$0xff]
    %v41 = vld [vmem:[#allocation2 + $0x8] sm:$0xff]
    %v42 = vld [vmem:[#allocation2 + $0x10] sm:$0xff]
    %v43 = vld [vmem:[#allocation2 + $0x18] sm:$0xff]
    %v44 = vld [vmem:[#allocation2 + $0x20] sm:$0xff]
    %v45 = vld [vmem:[#allocation2 + $0x28] sm:$0xff]
    %v46 = vld [vmem:[#allocation5] sm:$0xff]
    %v47 = vld [vmem:[#allocation5 + $0x8] sm:$0xff]
    %v48 = vld [vmem:[#allocation5 + $0x10] sm:$0xff]
    %v49 = vadd.f32 %v40, %v46
    %v50 = vadd.f32 %v41, %v47
    %v51 = vadd.f32 %v42, %v48
    %v52 = vadd.f32 %v43, %v46
    %v53 = vadd.f32 %v44, %v47
    %v54 = vadd.f32 %v45, %v48
    %55 = vst [vmem:[#allocation7] sm:$0xff] %v49
    %56 = vst [vmem:[#allocation7 + $0x8] sm:$0xff] %v50
    %57 = vst [vmem:[#allocation7 + $0x10] sm:$0xff] %v51
    %58 = vst [vmem:[#allocation7 + $0x18] sm:$0xff] %v52
    %59 = vst [vmem:[#allocation7 + $0x20] sm:$0xff] %v53
    %60 = vst [vmem:[#allocation7 + $0x28] sm:$0xff] %v54
    // Predicated region
    $region18: #{tpu_custom_call.1} parent=1 // pred_check
      _
    $region19: #{tpu_custom_call.1} parent=1 // pred_check_branch
      %62 = sbr.rel (0) target = $region21
    $region20: #{tpu_custom_call.1} parent=1 // pred_region
      %s64 = ssub.s32 768, 768
      %65 = vsyncadd [#allocation4], %s64
      %s66 = sshll.u32 [#allocation7], 4
      %s67 = int_to_ptr.vmem [resolvable:$true] %s66
      %72 = dma.vmem_to_hbm [thread:$0]  %s67, 768, %s2, [#allocation4], 128, 128, 8
    $region21: #{tpu_custom_call.1} parent=1 // pred_fallthru
      _
    // Predicated region
    $region22: #{tpu_custom_call.1} parent=1 // pred_check
      _
    $region23: #{tpu_custom_call.1} parent=1 // pred_check_branch
      %74 = sbr.rel (0) target = $region25
    $region24: #{tpu_custom_call.1} parent=1 // pred_region
      %75 = dma.done [#allocation4], 768
    $region25: #{tpu_custom_call.1} parent=1 // pred_fallthru
      _
    %76 = vsyncpa [#allocation3], 1
    %77 = vsyncpa [#allocation6], 1
    %78 = vsyncpa [#allocation4], 1

</llo_original>
